<compile_context>
chip_gen: v7x
topology: tpu7x:2x2x1
jax: 0.10.0
libtpu: 0.0.40
codegen_flags: <defaults>
</compile_context>

<pallas_src>
import functools

import jax
import jax.numpy as jnp
from jax.experimental import pallas as pl
from jax.experimental.pallas import tpu as pltpu


# ----------------------------------------------------------------------------
# Config (mirrors the fields QNet.__init__ reads from `config`)
# ----------------------------------------------------------------------------
class Config:
    NoHiLayer = 2                  # number of hidden (Linear+ReLU) layers
    nodes = [64, 32, 32, 8]        # [in_features, hidden..., out_features]


def _round_up(x, m):
    return ((x + m - 1) // m) * m


def _choose_batch_tile(batch, block_batch):
    # Keep >=2 grid steps on biggish batches so the "parallel" grid axis feeds both
    # v7x TensorCores; tiny batches just use one full-array tile.
    min_steps = 2 if batch >= 2048 else 1
    tb = min(block_batch, pl.cdiv(batch, min_steps))
    if tb < batch:
        tb = _round_up(tb, 8)          # sublane-aligned streamed tiles
    if tb >= batch:
        tb = batch                     # single tile equal to the full array dim
    return tb


# ----------------------------------------------------------------------------
# Kernel: one (tb, in_features) batch tile through the whole MLP.
#   x_ref : (tb, nodes[0])          native input dtype, streamed per grid step
#   w_ref : (L, max_in, max_out)    compute dtype, layer l's W^T lives in [:in_l, :out_l]
#   b_ref : (L, max_out)            f32, layer l's bias lives in [:out_l]
#   o_ref : (tb, nodes[-1])         f32, streamed per grid step
# Weight/bias slabs have constant index_maps -> resident in VMEM across the grid.
# ----------------------------------------------------------------------------
def qnet_mlp_kernel(x_ref, w_ref, b_ref, o_ref, *, layer_dims):
    num_layers = len(layer_dims)
    # Per-tile cast to the compute dtype (VPU work hidden under the input DMA).
    h = x_ref[...].astype(w_ref.dtype)
    for layer, (din, dout) in enumerate(layer_dims):
        w = w_ref[layer, 0:din, 0:dout]                  # static slice of resident slab
        b = b_ref[layer:layer + 1, 0:dout]               # (1, dout) f32 row
        acc = jnp.dot(h, w, preferred_element_type=jnp.float32) + b
        if layer < num_layers - 1:                       # hidden layers -> ReLU
            h = jnp.maximum(acc, 0.0).astype(w_ref.dtype)
        else:                                            # final linear layer (QNet.out)
            # TODO(synk): a lane-dense (transposed / 128-packed) output layout would turn
            # these (tb, 8) masked vst.msk stores into full-width stores; low single-digit
            # % here since output bytes are tiny vs. the x stream.
            o_ref[...] = acc.astype(o_ref.dtype)


# ----------------------------------------------------------------------------
# Parameter init: deterministic, PyTorch-nn.Linear-style U(-1/sqrt(fan_in), +).
# Weights stored PyTorch-style as (out_features, in_features).
# ----------------------------------------------------------------------------
def init_qnet_params(config, key):
    params = []
    sizes = config.nodes
    for i in range(config.NoHiLayer + 1):                # hidden layers + self.out
        fan_in, fan_out = sizes[i], sizes[i + 1]
        key, kw, kb = jax.random.split(key, 3)
        bound = 1.0 / (fan_in ** 0.5)
        w = jax.random.uniform(kw, (fan_out, fan_in), jnp.float32, -bound, bound)
        b = jax.random.uniform(kb, (fan_out,), jnp.float32, -bound, bound)
        params.append((w, b))
    return params


# ----------------------------------------------------------------------------
# One-time packing of all layers' params into two VMEM-resident slabs.
# Weights pre-transposed to (in, out) so the hot loop is plain `h @ W + b`.
# ----------------------------------------------------------------------------
def pack_qnet_params(params, config, *, compute_dtype=jnp.bfloat16):
    layer_dims = tuple((config.nodes[i], config.nodes[i + 1])
                       for i in range(config.NoHiLayer + 1))
    num_layers = len(layer_dims)
    max_in = max(d for d, _ in layer_dims)
    max_out = max(d for _, d in layer_dims)
    w_slab = jnp.zeros((num_layers, max_in, max_out), compute_dtype)
    b_slab = jnp.zeros((num_layers, max_out), jnp.float32)
    for l, (w, b) in enumerate(params):
        din, dout = layer_dims[l]
        w_slab = w_slab.at[l, :din, :dout].set(w.T.astype(compute_dtype))
        b_slab = b_slab.at[l, :dout].set(b.astype(jnp.float32))
    return {"w_slab": w_slab, "b_slab": b_slab, "layer_dims": layer_dims}


# ----------------------------------------------------------------------------
# Wrapper: flatten only; everything else happens in the Pallas kernel.
# ----------------------------------------------------------------------------
def qnet_forward(x, packed, config, *, block_batch=4096):
    w_slab, b_slab = packed["w_slab"], packed["b_slab"]
    layer_dims = packed["layer_dims"]

    batch = x.shape[0]
    x_flat = x.reshape(batch, -1)                        # x.reshape(x.shape[0], -1)
    in_features = x_flat.shape[1]
    assert in_features == config.nodes[0], "input flatten size must match nodes[0]"
    out_features = config.nodes[-1]
    num_layers, max_in, max_out = w_slab.shape

    # Batch tiling (no padding / no extra cast pass over x).
    block_batch = max(8, min(int(block_batch), 32768))
    tb = _choose_batch_tile(batch, block_batch)
    grid = (pl.cdiv(batch, tb),)

    # VMEM budget -> explicit scoped limit (double-buffered x/out tiles + resident slabs
    # + activation headroom). Stays far below physical VMEM on v5e/v6e/v7x.
    in_bytes = jnp.dtype(x_flat.dtype).itemsize
    w_bytes = jnp.dtype(w_slab.dtype).itemsize
    vmem_est = (2 * tb * in_features * in_bytes
                + 2 * tb * out_features * 4
                + w_slab.size * w_bytes + b_slab.size * 4
                + 2 * tb * max_out * 4)
    vmem_limit = int(min(max(2 * vmem_est, 16 << 20), 48 << 20))

    flops = 2 * batch * sum(din * dout for din, dout in layer_dims)
    bytes_accessed = (x_flat.size * in_bytes + batch * out_features * 4
                      + w_slab.size * w_bytes + b_slab.size * 4)

    # TODO(synk): if a profile ever shows exposed input DMA at the chosen tb, sweep
    # pipeline_mode=pl.Buffered(3) on the x BlockSpec.
    kernel = functools.partial(qnet_mlp_kernel, layer_dims=layer_dims)
    out = pl.pallas_call(
        kernel,
        out_shape=jax.ShapeDtypeStruct((batch, out_features), jnp.float32),
        grid=grid,
        in_specs=[
            pl.BlockSpec((tb, in_features), lambda i: (i, 0)),                 # streamed
            pl.BlockSpec((num_layers, max_in, max_out), lambda i: (0, 0, 0)),  # resident
            pl.BlockSpec((num_layers, max_out), lambda i: (0, 0)),             # resident
        ],
        out_specs=pl.BlockSpec((tb, out_features), lambda i: (i, 0)),
        compiler_params=pltpu.CompilerParams(
            dimension_semantics=("parallel",),
            vmem_limit_bytes=vmem_limit),
        cost_estimate=pl.CostEstimate(flops=flops, transcendentals=0,
                                      bytes_accessed=bytes_accessed),
    )(x_flat, w_slab, b_slab)
    return out


# ----------------------------------------------------------------------------
# Pure-JAX reference (exact PyTorch forward semantics, f32).
# ----------------------------------------------------------------------------
def qnet_forward_ref(x, params, config):
    h = x.reshape(x.shape[0], -1).astype(jnp.float32)
    for i, (w, b) in enumerate(params):
        h = h @ w.T + b
        if i < config.NoHiLayer:
            h = jnp.maximum(h, 0.0)
    return h


if __name__ == "__main__":
    config = Config()
    key = jax.random.PRNGKey(0)
    key, k_small, k_big = jax.random.split(key, 3)
    params = init_qnet_params(config, key)

    # Pack slabs ONCE (hoisted out of the forward path).
    packed_f32 = pack_qnet_params(params, config, compute_dtype=jnp.float32)
    packed_bf16 = pack_qnet_params(params, config, compute_dtype=jnp.bfloat16)

    # Small input (batch=2); flattened size 4*16 = 64 = nodes[0].
    x_small = jax.random.normal(k_small, (2, 4, 16), dtype=jnp.float32)
    ref_small = qnet_forward_ref(x_small, params, config)

    # Exact f32 path -> must match the PyTorch-semantics reference tightly.
    out_f32 = jax.block_until_ready(qnet_forward(x_small, packed_f32, config))
    assert out_f32.shape == (2, config.nodes[-1])
    assert jnp.allclose(out_f32, ref_small, atol=1e-5, rtol=1e-5), "f32 path mismatch"

    # Default bf16 matmul path (f32 MXU accumulation) -> close to the f32 reference.
    out_bf16 = jax.block_until_ready(qnet_forward(x_small, packed_bf16, config))
    assert jnp.allclose(out_bf16, ref_small, atol=1e-1, rtol=1e-1), "bf16 path mismatch"

    # Larger, non-aligned batch: exercises the ragged batch grid (cdiv(300,128)=3 steps,
    # last block partial), native-dtype streaming, resident slabs, parallel semantics.
    x_big = jax.random.normal(k_big, (300, 4, 16), dtype=jnp.float32)
    out_big = jax.block_until_ready(
        qnet_forward(x_big, packed_bf16, config, block_batch=128))
    ref_big = qnet_forward_ref(x_big, params, config)
    assert out_big.shape == (300, config.nodes[-1])
    assert jnp.allclose(out_big, ref_big, atol=1e-1, rtol=1e-1), "tiled path mismatch"

    print("KERNEL_OK")
</pallas_src>

<mosaic_0001>
module attributes {stable_mosaic.version = 11 : i64} {
  func.func @qnet_mlp_kernel(%arg0: i32, %arg1: memref<2x64xf32, #tpu.memory_space<vmem>>, %arg2: memref<3x64x32xf32, #tpu.memory_space<vmem>>, %arg3: memref<3x32xf32, #tpu.memory_space<vmem>>, %arg4: memref<2x8xf32, #tpu.memory_space<vmem>>) attributes {dimension_semantics = [#tpu.dimension_semantics<parallel>], iteration_bounds = array<i64: 1>, scalar_prefetch = 0 : i64, scratch_operands = 0 : i64, tpu.core_type = #tpu.core_type<tc>, window_params = [{transform_indices = @transform_0, window_bounds = array<i64: 2, 64>}, {pipeline_mode = #tpu.pipeline_mode<synchronous>, transform_indices = @transform_1, window_bounds = array<i64: 3, 64, 32>}, {pipeline_mode = #tpu.pipeline_mode<synchronous>, transform_indices = @transform_2, window_bounds = array<i64: 3, 32>}, {transform_indices = @transform_3, window_bounds = array<i64: 2, 8>}]} {
    %c0 = arith.constant 0 : index
    %c0_0 = arith.constant 0 : index
    %0 = vector.load %arg1[%c0, %c0_0] : memref<2x64xf32, #tpu.memory_space<vmem>>, vector<2x64xf32>
    %c0_1 = arith.constant 0 : index
    %c0_2 = arith.constant 0 : index
    %c0_3 = arith.constant 0 : index
    %1 = vector.load %arg2[%c0_1, %c0_2, %c0_3] : memref<3x64x32xf32, #tpu.memory_space<vmem>>, vector<1x64x32xf32>
    %2 = vector.shape_cast %1 : vector<1x64x32xf32> to vector<64x32xf32>
    %c0_4 = arith.constant 0 : index
    %c0_5 = arith.constant 0 : index
    %3 = vector.load %arg3[%c0_4, %c0_5] : memref<3x32xf32, #tpu.memory_space<vmem>>, vector<1x32xf32>
    %cst = arith.constant dense<0.000000e+00> : vector<2x32xf32>
    %4 = tpu.matmul %0, %2, %cst {dimension_numbers = #tpu.dot_dimension_numbers<[1], [0], [0], [1], [0, 0, 1, 1], [], []>} : vector<2x64xf32>, vector<64x32xf32>, vector<2x32xf32> -> vector<2x32xf32>
    %5 = vector.broadcast %3 : vector<1x32xf32> to vector<2x32xf32>
    %6 = arith.addf %4, %5 : vector<2x32xf32>
    %cst_6 = arith.constant 0.000000e+00 : f32
    %7 = vector.broadcast %cst_6 : f32 to vector<2x32xf32>
    %8 = arith.maximumf %6, %7 : vector<2x32xf32>
    %c1 = arith.constant 1 : index
    %c0_7 = arith.constant 0 : index
    %c0_8 = arith.constant 0 : index
    %9 = vector.load %arg2[%c1, %c0_7, %c0_8] : memref<3x64x32xf32, #tpu.memory_space<vmem>>, vector<1x32x32xf32>
    %10 = vector.shape_cast %9 : vector<1x32x32xf32> to vector<32x32xf32>
    %c1_9 = arith.constant 1 : index
    %c0_10 = arith.constant 0 : index
    %11 = vector.load %arg3[%c1_9, %c0_10] : memref<3x32xf32, #tpu.memory_space<vmem>>, vector<1x32xf32>
    %cst_11 = arith.constant dense<0.000000e+00> : vector<2x32xf32>
    %12 = tpu.matmul %8, %10, %cst_11 {dimension_numbers = #tpu.dot_dimension_numbers<[1], [0], [0], [1], [0, 0, 1, 1], [], []>} : vector<2x32xf32>, vector<32x32xf32>, vector<2x32xf32> -> vector<2x32xf32>
    %13 = vector.broadcast %11 : vector<1x32xf32> to vector<2x32xf32>
    %14 = arith.addf %12, %13 : vector<2x32xf32>
    %cst_12 = arith.constant 0.000000e+00 : f32
    %15 = vector.broadcast %cst_12 : f32 to vector<2x32xf32>
    %16 = arith.maximumf %14, %15 : vector<2x32xf32>
    %c2 = arith.constant 2 : index
    %c0_13 = arith.constant 0 : index
    %c0_14 = arith.constant 0 : index
    %17 = vector.load %arg2[%c2, %c0_13, %c0_14] : memref<3x64x32xf32, #tpu.memory_space<vmem>>, vector<1x32x8xf32>
    %18 = vector.shape_cast %17 : vector<1x32x8xf32> to vector<32x8xf32>
    %c2_15 = arith.constant 2 : index
    %c0_16 = arith.constant 0 : index
    %19 = vector.load %arg3[%c2_15, %c0_16] : memref<3x32xf32, #tpu.memory_space<vmem>>, vector<1x8xf32>
    %cst_17 = arith.constant dense<0.000000e+00> : vector<2x8xf32>
    %20 = tpu.matmul %16, %18, %cst_17 {dimension_numbers = #tpu.dot_dimension_numbers<[1], [0], [0], [1], [0, 0, 1, 1], [], []>} : vector<2x32xf32>, vector<32x8xf32>, vector<2x8xf32> -> vector<2x8xf32>
    %21 = vector.broadcast %19 : vector<1x8xf32> to vector<2x8xf32>
    %22 = arith.addf %20, %21 : vector<2x8xf32>
    %c0_18 = arith.constant 0 : index
    %c0_19 = arith.constant 0 : index
    %23 = vector.load %arg4[%c0_18, %c0_19] : memref<2x8xf32, #tpu.memory_space<vmem>>, vector<2x8xf32>
    tpu.vector_store %arg4[%c0_18, %c0_19], %22 {strides = array<i32>} : memref<2x8xf32, #tpu.memory_space<vmem>>, vector<2x8xf32>,
    return
  }
  func.func @transform_0(%arg0: i32) -> (i32, i32) {
    %c0_i32 = arith.constant 0 : i32
    %c0_i32_0 = arith.constant 0 : i32
    return %arg0, %c0_i32 : i32, i32
  }
  func.func @transform_1(%arg0: i32) -> (i32, i32, i32) {
    %c0_i32 = arith.constant 0 : i32
    %c0_i32_0 = arith.constant 0 : i32
    %c0_i32_1 = arith.constant 0 : i32
    %c0_i32_2 = arith.constant 0 : i32
    return %c0_i32, %c0_i32_0, %c0_i32_1 : i32, i32, i32
  }
  func.func @transform_2(%arg0: i32) -> (i32, i32) {
    %c0_i32 = arith.constant 0 : i32
    %c0_i32_0 = arith.constant 0 : i32
    %c0_i32_1 = arith.constant 0 : i32
    return %c0_i32, %c0_i32_0 : i32, i32
  }
  func.func @transform_3(%arg0: i32) -> (i32, i32) {
    %c0_i32 = arith.constant 0 : i32
    %c0_i32_0 = arith.constant 0 : i32
    return %arg0, %c0_i32 : i32, i32
  }
}

</mosaic_0001>

<llo_original>
// kernel: tpu_custom_call.1
$region0: #{tpu_custom_call.1}
  #allocation0 [shape = 'u32[]', space=smem, size = 0x4, offset = 0x4, fixed_abs, tag = 'smem constant byte address 0x4 - core index']
  #allocation1 [shape = 'u32[144,128]{1,0:T(1,128)}', space=vmem, size = 0x12000, scoped, tag = 'internal scratch']
  %s0 = inlined_call_operand.vmem [shape: f32[2,64], index: 0, kind: input, shape index: {}]
  %s1 = inlined_call_operand.vmem [shape: f32[3,64,32], index: 1, kind: input, shape index: {}]
  %s2 = inlined_call_operand.vmem [shape: f32[3,32], index: 2, kind: input, shape index: {}]
  %s3 = inlined_call_operand.hbm [shape: f32[2,8], index: 3, kind: output, shape index: {}]
  %s4 = sld [smem:[#allocation0]]
  $region22: #{tpu_custom_call.1} parent=0
    _
  %s6 = ssub.s32 1, %s4
  %s7 = scalar_select 0, %s6, %s4
  $region1: #{tpu_custom_call.1} parent=0
    #allocation2 [shape = 'u8[1024]{0}', space=vmem, size = 0x400, scoped, tag = 'output window, operand 0, single buffered']
    #allocation3 [shape = 's32[1]{0}', space=sflag, size = 0x4, scoped, tag = 'scoped memory for tpu_custom_call.1']
    %8 = vsyncpa [#allocation3], 0
    // Predicated region
    $region2: #{tpu_custom_call.1} parent=1 // pred_check
      _
    $region3: #{tpu_custom_call.1} parent=1 // pred_check_branch
      %10 = sbr.rel (0) target = $region5
    $region4: #{tpu_custom_call.1} parent=1 // pred_region
      _
    $region5: #{tpu_custom_call.1} parent=1 // pred_fallthru
      _
    // Predicated region
    $region6: #{tpu_custom_call.1} parent=1 // pred_check
      _
    $region7: #{tpu_custom_call.1} parent=1 // pred_check_branch
      %12 = sbr.rel (0) target = $region9
    $region8: #{tpu_custom_call.1} parent=1 // pred_region
      _
    $region9: #{tpu_custom_call.1} parent=1 // pred_fallthru
      _
    // Predicated region
    $region10: #{tpu_custom_call.1} parent=1 // pred_check
      _
    $region11: #{tpu_custom_call.1} parent=1 // pred_check_branch
      %14 = sbr.rel (0) target = $region13
    $region12: #{tpu_custom_call.1} parent=1 // pred_region
      _
    $region13: #{tpu_custom_call.1} parent=1 // pred_fallthru
      _
    %v15 = vld [vmem:[%s0] sm:$0x3]
    %v16 = vld [vmem:[%s1] sm:$0xff]
    %v17 = vld [vmem:[%s1 + $0x8] sm:$0xff]
    %v18 = vld [vmem:[%s1 + $0x10] sm:$0xff]
    %v19 = vld [vmem:[%s1 + $0x18] sm:$0xff]
    %v20 = vld [vmem:[%s1 + $0x20] sm:$0xff]
    %v21 = vld [vmem:[%s1 + $0x28] sm:$0xff]
    %v22 = vld [vmem:[%s1 + $0x30] sm:$0xff]
    %v23 = vld [vmem:[%s1 + $0x38] sm:$0xff]
    %v24 = vld [vmem:[%s2] sm:$0x1]
    %v25 = vlaneseq
    %v26 = vshrl.u32 %v25, 7
    %v27 = vsub.s32 0, %v26
    %v28 = vrot.slane %v24, %v27
    %vm29 = vcmask 523264
    %v31 = vsel %vm29, %v15, 0
    %33 = vmatprep.subr.mxu0 0.0
    %34 = vmatpush1.msra.mxu0 %v16
    %35 = vmatprep.subr.mxu0 0.0
    %36 = vmatpush1.msra.mxu0 %v17
    %37 = vmatprep.subr.mxu0 0.0
    %38 = vmatpush1.msra.mxu0 %v18
    %39 = vmatprep.subr.mxu0 0.0
    %40 = vmatpush1.msra.mxu0 %v19
    %41 = vmatprep.subr.mxu0 0.0
    %42 = vmatpush1.msra.mxu0 %v20
    %43 = vmatprep.subr.mxu0 0.0
    %44 = vmatpush1.msra.mxu0 %v21
    %45 = vmatprep.subr.mxu0 0.0
    %46 = vmatpush1.msra.mxu0 %v22
    %47 = vmatprep.subr.mxu0 0.0
    %48 = vmatpush1.msra.mxu0 %v23
    %49 = vmatprep.subr.mxu0 0.0
    %50 = vmatpush1.msra.mxu0 0.0
    %51 = vmatprep.subr.mxu0 0.0
    %52 = vmatpush1.msra.mxu0 0.0
    %53 = vmatprep.subr.mxu0 0.0
    %54 = vmatpush1.msra.mxu0 0.0
    %55 = vmatprep.subr.mxu0 0.0
    %56 = vmatpush1.msra.mxu0 0.0
    %57 = vmatprep.subr.mxu0 0.0
    %58 = vmatpush1.msra.mxu0 0.0
    %59 = vmatprep.subr.mxu0 0.0
    %60 = vmatpush1.msra.mxu0 0.0
    %61 = vmatprep.subr.mxu0 0.0
    %62 = vmatpush1.msra.mxu0 0.0
    %63 = vmatprep.subr.mxu0 0.0
    %64 = vmatpush1.msra.mxu0 0.0
    %65 = vmatprep.subr.mxu0 0.0
    %66 = vmatpush1.msra.mxu0 0.0
    %67 = vmatprep.subr.mxu0 0.0
    %68 = vmatpush1.msra.mxu0 0.0
    %69 = vmatprep.subr.mxu0 0.0
    %70 = vmatpush1.msra.mxu0 0.0
    %71 = vmatprep.subr.mxu0 0.0
    %72 = vmatpush1.msra.mxu0 0.0
    %73 = vmatprep.subr.mxu0 0.0
    %74 = vmatpush1.msra.mxu0 0.0
    %75 = vmatprep.subr.mxu0 0.0
    %76 = vmatpush1.msra.mxu0 0.0
    %77 = vmatprep.subr.mxu0 0.0
    %78 = vmatpush1.msra.mxu0 0.0
    %79 = vmatprep.subr.mxu0 0.0
    %80 = vmatpush1.msra.mxu0 0.0
    %81 = vmatprep.subr.mxu0 0.0
    %82 = vmatpush1.msra.mxu0 0.0
    %83 = vmatprep.subr.mxu0 0.0
    %84 = vmatpush1.msra.mxu0 0.0
    %85 = vmatprep.subr.mxu0 0.0
    %86 = vmatpush1.msra.mxu0 0.0
    %87 = vmatprep.subr.mxu0 0.0
    %88 = vmatpush1.msra.mxu0 0.0
    %89 = vmatprep.subr.mxu0 0.0
    %90 = vmatpush1.msra.mxu0 0.0
    %91 = vmatprep.subr.mxu0 0.0
    %92 = vmatpush1.msra.mxu0 0.0
    %93 = vmatprep.subr.mxu0 0.0
    %94 = vmatpush1.msra.mxu0 0.0
    %95 = vmatprep.subr.mxu0 0.0
    %96 = vmatpush1.msra.mxu0 0.0
    %97 = vmatprep.mubr.f32.mxu0 0.0
    %98 = vmatmul.mubr.f32.gmra.mrb[0].mxu0 %v31
    %v99 = vpop.f32.mrb[0].mxu0
    %v100 = vadd.f32 %v28, %v99
    %v101 = vpop.f32.mrb[0].mxu0
    %102 = vdwg.mxu0
    %v103 = vmax.f32 %v100, 0.0
    %s104 = scalar_lea.vmem %s1, 64
    %v105 = vld [vmem:[%s104] sm:$0xff]
    %v106 = vld [vmem:[%s104 + $0x8] sm:$0xff]
    %v107 = vld [vmem:[%s104 + $0x10] sm:$0xff]
    %v108 = vld [vmem:[%s104 + $0x18] sm:$0xff]
    %v109 = vld [vmem:[%s2 + $0x1] sm:$0x1]
    %v110 = vlaneseq
    %v111 = vshrl.u32 %v110, 7
    %v112 = vsub.s32 0, %v111
    %v113 = vrot.slane %v109, %v112
    %vm114 = vcmask 261120
    %v116 = vsel %vm114, %v103, 0
    %118 = vmatprep.subr.mxu0 0.0
    %119 = vmatpush1.msra.mxu0 %v105
    %120 = vmatprep.subr.mxu0 0.0
    %121 = vmatpush1.msra.mxu0 %v106
    %122 = vmatprep.subr.mxu0 0.0
    %123 = vmatpush1.msra.mxu0 %v107
    %124 = vmatprep.subr.mxu0 0.0
    %125 = vmatpush1.msra.mxu0 %v108
    %126 = vmatprep.subr.mxu0 0.0
    %127 = vmatpush1.msra.mxu0 0.0
    %128 = vmatprep.subr.mxu0 0.0
    %129 = vmatpush1.msra.mxu0 0.0
    %130 = vmatprep.subr.mxu0 0.0
    %131 = vmatpush1.msra.mxu0 0.0
    %132 = vmatprep.subr.mxu0 0.0
    %133 = vmatpush1.msra.mxu0 0.0
    %134 = vmatprep.subr.mxu0 0.0
    %135 = vmatpush1.msra.mxu0 0.0
    %136 = vmatprep.subr.mxu0 0.0
    %137 = vmatpush1.msra.mxu0 0.0
    %138 = vmatprep.subr.mxu0 0.0
    %139 = vmatpush1.msra.mxu0 0.0
    %140 = vmatprep.subr.mxu0 0.0
    %141 = vmatpush1.msra.mxu0 0.0
    %142 = vmatprep.subr.mxu0 0.0
    %143 = vmatpush1.msra.mxu0 0.0
    %144 = vmatprep.subr.mxu0 0.0
    %145 = vmatpush1.msra.mxu0 0.0
    %146 = vmatprep.subr.mxu0 0.0
    %147 = vmatpush1.msra.mxu0 0.0
    %148 = vmatprep.subr.mxu0 0.0
    %149 = vmatpush1.msra.mxu0 0.0
    %150 = vmatprep.subr.mxu0 0.0
    %151 = vmatpush1.msra.mxu0 0.0
    %152 = vmatprep.subr.mxu0 0.0
    %153 = vmatpush1.msra.mxu0 0.0
    %154 = vmatprep.subr.mxu0 0.0
    %155 = vmatpush1.msra.mxu0 0.0
    %156 = vmatprep.subr.mxu0 0.0
    %157 = vmatpush1.msra.mxu0 0.0
    %158 = vmatprep.subr.mxu0 0.0
    %159 = vmatpush1.msra.mxu0 0.0
    %160 = vmatprep.subr.mxu0 0.0
    %161 = vmatpush1.msra.mxu0 0.0
    %162 = vmatprep.subr.mxu0 0.0
    %163 = vmatpush1.msra.mxu0 0.0
    %164 = vmatprep.subr.mxu0 0.0
    %165 = vmatpush1.msra.mxu0 0.0
    %166 = vmatprep.subr.mxu0 0.0
    %167 = vmatpush1.msra.mxu0 0.0
    %168 = vmatprep.subr.mxu0 0.0
    %169 = vmatpush1.msra.mxu0 0.0
    %170 = vmatprep.subr.mxu0 0.0
    %171 = vmatpush1.msra.mxu0 0.0
    %172 = vmatprep.subr.mxu0 0.0
    %173 = vmatpush1.msra.mxu0 0.0
    %174 = vmatprep.subr.mxu0 0.0
    %175 = vmatpush1.msra.mxu0 0.0
    %176 = vmatprep.subr.mxu0 0.0
    %177 = vmatpush1.msra.mxu0 0.0
    %178 = vmatprep.subr.mxu0 0.0
    %179 = vmatpush1.msra.mxu0 0.0
    %180 = vmatprep.subr.mxu0 0.0
    %181 = vmatpush1.msra.mxu0 0.0
    %182 = vmatprep.mubr.f32.mxu0 0.0
    %183 = vmatmul.mubr.f32.gmra.mrb[0].mxu0 %v116
    %v184 = vpop.f32.mrb[0].mxu0
    %v185 = vadd.f32 %v113, %v184
    %v186 = vpop.f32.mrb[0].mxu0
    %187 = vdwg.mxu0
    %v188 = vmax.f32 %v185, 0.0
    %s189 = scalar_lea.vmem %s1, 128
    %v190 = vld [vmem:[%s189] sm:$0xff]
    %v191 = vld [vmem:[%s189 + $0x8] sm:$0xff]
    %v192 = vld [vmem:[%s189 + $0x10] sm:$0xff]
    %v193 = vld [vmem:[%s189 + $0x18] sm:$0xff]
    %v194 = vld [vmem:[%s2 + $0x2] sm:$0x1]
    %v195 = vlaneseq
    %v196 = vshrl.u32 %v195, 7
    %v197 = vsub.s32 0, %v196
    %v198 = vrot.slane %v194, %v197
    %v200 = vsel %vm114, %v188, 0
    %202 = vmatprep.subr.mxu0 0.0
    %203 = vmatpush1.msra.mxu0 %v190
    %204 = vmatprep.subr.mxu0 0.0
    %205 = vmatpush1.msra.mxu0 %v191
    %206 = vmatprep.subr.mxu0 0.0
    %207 = vmatpush1.msra.mxu0 %v192
    %208 = vmatprep.subr.mxu0 0.0
    %209 = vmatpush1.msra.mxu0 %v193
    %210 = vmatprep.subr.mxu0 0.0
    %211 = vmatpush1.msra.mxu0 0.0
    %212 = vmatprep.subr.mxu0 0.0
    %213 = vmatpush1.msra.mxu0 0.0
    %214 = vmatprep.subr.mxu0 0.0
    %215 = vmatpush1.msra.mxu0 0.0
    %216 = vmatprep.subr.mxu0 0.0
    %217 = vmatpush1.msra.mxu0 0.0
    %218 = vmatprep.subr.mxu0 0.0
    %219 = vmatpush1.msra.mxu0 0.0
    %220 = vmatprep.subr.mxu0 0.0
    %221 = vmatpush1.msra.mxu0 0.0
    %222 = vmatprep.subr.mxu0 0.0
    %223 = vmatpush1.msra.mxu0 0.0
    %224 = vmatprep.subr.mxu0 0.0
    %225 = vmatpush1.msra.mxu0 0.0
    %226 = vmatprep.subr.mxu0 0.0
    %227 = vmatpush1.msra.mxu0 0.0
    %228 = vmatprep.subr.mxu0 0.0
    %229 = vmatpush1.msra.mxu0 0.0
    %230 = vmatprep.subr.mxu0 0.0
    %231 = vmatpush1.msra.mxu0 0.0
    %232 = vmatprep.subr.mxu0 0.0
    %233 = vmatpush1.msra.mxu0 0.0
    %234 = vmatprep.subr.mxu0 0.0
    %235 = vmatpush1.msra.mxu0 0.0
    %236 = vmatprep.subr.mxu0 0.0
    %237 = vmatpush1.msra.mxu0 0.0
    %238 = vmatprep.subr.mxu0 0.0
    %239 = vmatpush1.msra.mxu0 0.0
    %240 = vmatprep.subr.mxu0 0.0
    %241 = vmatpush1.msra.mxu0 0.0
    %242 = vmatprep.subr.mxu0 0.0
    %243 = vmatpush1.msra.mxu0 0.0
    %244 = vmatprep.subr.mxu0 0.0
    %245 = vmatpush1.msra.mxu0 0.0
    %246 = vmatprep.subr.mxu0 0.0
    %247 = vmatpush1.msra.mxu0 0.0
    %248 = vmatprep.subr.mxu0 0.0
    %249 = vmatpush1.msra.mxu0 0.0
    %250 = vmatprep.subr.mxu0 0.0
    %251 = vmatpush1.msra.mxu0 0.0
    %252 = vmatprep.subr.mxu0 0.0
    %253 = vmatpush1.msra.mxu0 0.0
    %254 = vmatprep.subr.mxu0 0.0
    %255 = vmatpush1.msra.mxu0 0.0
    %256 = vmatprep.subr.mxu0 0.0
    %257 = vmatpush1.msra.mxu0 0.0
    %258 = vmatprep.subr.mxu0 0.0
    %259 = vmatpush1.msra.mxu0 0.0
    %260 = vmatprep.subr.mxu0 0.0
    %261 = vmatpush1.msra.mxu0 0.0
    %262 = vmatprep.subr.mxu0 0.0
    %263 = vmatpush1.msra.mxu0 0.0
    %264 = vmatprep.subr.mxu0 0.0
    %265 = vmatpush1.msra.mxu0 0.0
    %266 = vmatprep.mubr.f32.mxu0 0.0
    %267 = vmatmul.mubr.f32.gmra.mrb[0].mxu0 %v200
    %v268 = vpop.f32.mrb[0].mxu0
    %v269 = vadd.f32 %v198, %v268
    %v270 = vpop.f32.mrb[0].mxu0
    %271 = vdwg.mxu0
    %vm272 = vcmask 58368
    %273 = vst.msk [vmem:[#allocation2] sm:$0x3] %vm272, %v269
    // Predicated region
    $region14: #{tpu_custom_call.1} parent=1 // pred_check
      _
    $region15: #{tpu_custom_call.1} parent=1 // pred_check_branch
      %275 = sbr.rel (0) target = $region17
    $region16: #{tpu_custom_call.1} parent=1 // pred_region
      %s277 = ssub.s32 32, 32
      %278 = vsyncadd [#allocation3], %s277
      %s280 = sshll.u32 [#allocation2], 4
      %s281 = int_to_ptr.vmem [resolvable:$true] %s280
      %283 = dma.vmem_to_hbm [thread:$0]  %s281, 32, %s3, [#allocation3]
    $region17: #{tpu_custom_call.1} parent=1 // pred_fallthru
      _
    // Predicated region
    $region18: #{tpu_custom_call.1} parent=1 // pred_check
      _
    $region19: #{tpu_custom_call.1} parent=1 // pred_check_branch
      %285 = sbr.rel (0) target = $region21
    $region20: #{tpu_custom_call.1} parent=1 // pred_region
      %286 = dma.done [#allocation3], 32
    $region21: #{tpu_custom_call.1} parent=1 // pred_fallthru
      _
    %287 = vsyncpa [#allocation3], 1

</llo_original>
